<compile_context>
chip_gen: v5e
topology: v5e:2x2
jax: 0.10.0
libtpu: 0.0.40
codegen_flags: <defaults>
</compile_context>

<pallas_src>
import functools

import jax
import jax.numpy as jnp
from jax import lax
from jax.experimental import pallas as pl
from jax.experimental.pallas import tpu as pltpu


def _vmem_capacity_bytes():
    """Physical per-core VMEM; conservative fallback if the query fails."""
    try:
        info = pltpu.get_tpu_info()
        cap = int(getattr(info, "vmem_capacity_bytes", 0))
        if cap > 0:
            return cap
    except Exception:
        pass
    return 64 << 20          # v7x per-TC VMEM (the smallest of the targets)


# ---------------------------------------------------------------------------
# Input 1x1 conv (dim -> F) as a row-tiled bf16 matmul: rows = N*T, parallel.
# ---------------------------------------------------------------------------
def _rows_matmul_bias_kernel(x_ref, w_ref, b_ref, o_ref):
    o_ref[...] = (jnp.dot(x_ref[...], w_ref[...],
                          preferred_element_type=jnp.float32)
                  + b_ref[...]).astype(o_ref.dtype)


def _conv1x1_rows(x_2d, w, b, *, tile_rows=512, vmem_cap=None):
    r, cin = int(x_2d.shape[0]), int(x_2d.shape[1])
    cout = int(w.shape[1])
    tr = int(min(tile_rows, r))
    if tr < r:
        tr = max((tr // 8) * 8, 8)
    xb = jnp.dtype(x_2d.dtype).itemsize
    wb = jnp.dtype(w.dtype).itemsize
    est = 2 * (tr * cin * xb + cin * cout * wb + cout * 4 + tr * cout * 4)
    cap = vmem_cap if vmem_cap is not None else _vmem_capacity_bytes()
    vmem_limit = int(min(max(est * 2 + (8 << 20), 16 << 20), cap - (4 << 20)))
    return pl.pallas_call(
        _rows_matmul_bias_kernel,
        out_shape=jax.ShapeDtypeStruct((r, cout), jnp.float32),
        grid_spec=pltpu.PrefetchScalarGridSpec(
            num_scalar_prefetch=0,
            grid=(pl.cdiv(r, tr),),
            in_specs=[
                pl.BlockSpec((tr, cin), lambda i: (i, 0)),
                pl.BlockSpec((cin, cout), lambda i: (0, 0)),
                pl.BlockSpec((1, cout), lambda i: (0, 0)),
            ],
            out_specs=pl.BlockSpec((tr, cout), lambda i: (i, 0)),
        ),
        compiler_params=pltpu.CompilerParams(
            dimension_semantics=("parallel",),
            vmem_limit_bytes=vmem_limit),
    )(x_2d, w, b)


# ---------------------------------------------------------------------------
# Fused stage kernel: all DilatedResidualLayers + output 1x1 conv.
# One batch element per grid step; activations resident in f32 VMEM ping-pong
# buffers with zero halo rows; features DMA'd directly into the buffer.
# ---------------------------------------------------------------------------
def _fused_stage_kernel(x_hbm, wd_ref, bd_ref, w1_ref, b1_ref, wo_ref, bo_ref,
                        o_ref, buf_a, buf_b, in_sem, *,
                        dilations, kernel_size, causal, seq_len,
                        pad_left, pad_right, tile):
    num_layers = len(dilations)
    k_taps = kernel_size
    t_len = seq_len
    f = buf_a.shape[1]
    bufs = (buf_a, buf_b)
    b = pl.program_id(0)

    # DMA this batch element's projected features straight into the interior
    # of the ping buffer (no pipelined staging block, no VMEM->VMEM copy).
    copy_in = pltpu.make_async_copy(
        x_hbm.at[b], buf_a.at[pl.ds(pad_left, t_len), :], in_sem)
    copy_in.start()

    # Zero only the halo rows (this is the convs' zero padding).  Interiors
    # are fully rewritten every iteration; halos never are, but scratch is
    # per-core under a parallel grid, so re-zero cheaply every step (overlaps
    # with the in-flight DMA, which targets disjoint rows).
    if pad_left > 0:
        zl = jnp.zeros((pad_left, f), jnp.float32)
        buf_a[pl.ds(0, pad_left), :] = zl
        buf_b[pl.ds(0, pad_left), :] = zl
    if pad_right > 0:
        zr = jnp.zeros((pad_right, f), jnp.float32)
        buf_a[pl.ds(pad_left + t_len, pad_right), :] = zr
        buf_b[pl.ds(pad_left + t_len, pad_right), :] = zr

    copy_in.wait()

    def run_chunks(body):
        if tile >= t_len:
            body(0)
            return
        n_full = t_len // tile                       # static trip count
        if n_full <= 8:
            for i in range(n_full):
                body(i * tile)                       # fully static starts
        else:
            unroll = 2

            def loop_body(i, c):
                base = pl.multiple_of(i * (unroll * tile), 8)
                for u in range(unroll):
                    body(base + u * tile)
                return c

            lax.fori_loop(0, n_full // unroll, loop_body, 0)
            for i in range((n_full // unroll) * unroll, n_full):
                body(i * tile)                       # static leftover full chunk
        if n_full * tile < t_len:
            # Clamped remainder chunk (static start); it overlaps the previous
            # chunk with identical values, so the re-write is idempotent.
            body(t_len - tile)

    for layer_idx, dil in enumerate(dilations):
        cur = bufs[layer_idx % 2]
        nxt = bufs[(layer_idx + 1) % 2]
        is_last = layer_idx == num_layers - 1
        pad_l = (k_taps - 1) * dil if causal else (k_taps // 2) * dil
        w_taps = [wd_ref[layer_idx * k_taps + kk] for kk in range(k_taps)]   # bf16 (F,F)
        b_d = bd_ref[layer_idx]                                              # f32 (1,F)
        w_1 = w1_ref[layer_idx]                                              # bf16 (F,F)
        b_1 = b1_ref[layer_idx]                                              # f32 (1,F)

        def layer_chunk(t0, cur=cur, nxt=nxt, dil=dil, pad_l=pad_l,
                        is_last=is_last, w_taps=w_taps, b_d=b_d,
                        w_1=w_1, b_1=b_1):
            h = None
            res = None
            for kk in range(k_taps):
                off = pad_left + kk * dil - pad_l            # static python int
                tap = cur[pl.ds(t0 + off, tile), :]          # f32 (tile, F)
                if off == pad_left:
                    res = tap                                # zero-offset tap == residual rows
                d = jnp.dot(tap.astype(jnp.bfloat16), w_taps[kk],
                            preferred_element_type=jnp.float32)
                h = d if h is None else h + d
            if res is None:
                res = cur[pl.ds(t0 + pad_left, tile), :]
            h = jnp.maximum(h + b_d, 0.0)                    # bias + ReLU
            h = jnp.dot(h.astype(jnp.bfloat16), w_1,
                        preferred_element_type=jnp.float32) + b_1
            # TODO(synk): nn.Dropout() is identity in eval mode; training-mode
            # dropout (p=0.5) would need pltpu.prng_* and is not implemented.
            feat_new = res + h                               # f32 residual add
            if is_last:
                # Fused output 1x1 conv: logits computed while feat_new is in
                # vregs; classes are padded to 128 lanes -> unmasked store.
                logits = jnp.dot(feat_new.astype(jnp.bfloat16), wo_ref[...],
                                 preferred_element_type=jnp.float32) + bo_ref[...]
                o_ref[pl.ds(t0, tile), :] = logits
            else:
                nxt[pl.ds(t0 + pad_left, tile), :] = feat_new

        run_chunks(layer_chunk)


# ---------------------------------------------------------------------------
# Wrapper: full SingleStageModel forward.  x is PyTorch NCW (N, dim, T).
# params = {"conv_in": (w, b), "layers": [(wd, bd, w1, b1), ...],
#           "conv_out": (w, b)} with PyTorch Conv1d weight layouts.
# ---------------------------------------------------------------------------
def single_stage_model_forward(x_ncw, params, *, kernel_size=3, causal=False,
                               tile_t=None, tile_rows=512):
    n, dim, t = (int(s) for s in x_ncw.shape)
    w_in, b_in = params["conv_in"]
    w_out, b_out = params["conv_out"]
    layers = params["layers"]
    num_layers = len(layers)
    assert num_layers >= 1, "SingleStageModel needs at least one layer"
    f = int(w_in.shape[0])
    n_cls = int(w_out.shape[0])
    dilations = tuple(2 ** i for i in range(num_layers))
    assert causal or kernel_size % 2 == 1, \
        "non-causal padding assumes an odd kernel_size (PyTorch Conv1d parity)"
    k = kernel_size
    cap = _vmem_capacity_bytes()

    # ---- channels-last once; input 1x1 conv (dim -> F) in bf16 on the MXU --
    x_rows = jnp.transpose(x_ncw, (0, 2, 1)).astype(jnp.bfloat16).reshape(n * t, dim)
    w_in_m = jnp.transpose(w_in.astype(jnp.float32)[:, :, 0], (1, 0)).astype(jnp.bfloat16)
    b_in_m = b_in.astype(jnp.float32).reshape(1, f)
    # feat stays f32 so it can be DMA'd straight into the f32 residual buffer.
    feat = _conv1x1_rows(x_rows, w_in_m, b_in_m, tile_rows=tile_rows,
                         vmem_cap=cap).reshape(n, t, f)

    # ---- per-layer weights: bf16 matrices, f32 biases ----------------------
    wd_all = jnp.stack([jnp.transpose(wd.astype(jnp.float32), (2, 1, 0))
                        for (wd, _, _, _) in layers])                  # (L,K,F,F) tap-major
    wd_all = wd_all.reshape(num_layers * k, f, f).astype(jnp.bfloat16)
    bd_all = jnp.stack([bd.astype(jnp.float32) for (_, bd, _, _) in layers]
                       ).reshape(num_layers, 1, f)
    w1_all = jnp.stack([jnp.transpose(w1.astype(jnp.float32)[:, :, 0], (1, 0))
                        for (_, _, w1, _) in layers]).astype(jnp.bfloat16)   # (L,F,F)
    b1_all = jnp.stack([b1.astype(jnp.float32) for (_, _, _, b1) in layers]
                       ).reshape(num_layers, 1, f)

    # output 1x1 conv, classes zero-padded to a lane-dense multiple of 128
    ncls_pad = -(-n_cls // 128) * 128
    w_out_m = jnp.transpose(w_out.astype(jnp.float32)[:, :, 0], (1, 0))      # (F, n_cls)
    w_out_p = jnp.pad(w_out_m, ((0, 0), (0, ncls_pad - n_cls))).astype(jnp.bfloat16)
    b_out_p = jnp.pad(b_out.astype(jnp.float32).reshape(1, n_cls),
                      ((0, 0), (0, ncls_pad - n_cls)))

    # ---- halo (exactly what the dilation stack needs) and chunking ---------
    max_dil = max(dilations)
    if causal:
        need_left, need_right = (k - 1) * max_dil, 0
    else:
        need_left = need_right = (k // 2) * max_dil
    pad_left = -(-need_left // 8) * 8              # 8-aligned interior start
    pad_right = need_right
    buf_rows = -(-(pad_left + t + pad_right) // 8) * 8

    tile = int(tile_t) if tile_t is not None else 512
    tile = min(tile, t)
    if tile < t:
        tile = max((tile // 8) * 8, 8)

    weight_bytes = int(wd_all.size * 2 + w1_all.size * 2 + w_out_p.size * 2
                       + (bd_all.size + b1_all.size + b_out_p.size) * 4)
    est = 2 * buf_rows * f * 4 + 2 * t * ncls_pad * 4 + 2 * weight_bytes
    vmem_limit = int(min(max(est * 3 // 2 + (8 << 20), 32 << 20), cap - (4 << 20)))

    kernel = functools.partial(
        _fused_stage_kernel, dilations=dilations, kernel_size=k, causal=causal,
        seq_len=t, pad_left=pad_left, pad_right=pad_right, tile=tile)

    out_pad = pl.pallas_call(
        kernel,
        out_shape=jax.ShapeDtypeStruct((n, t, ncls_pad), jnp.float32),
        grid_spec=pltpu.PrefetchScalarGridSpec(
            num_scalar_prefetch=0,
            grid=(n,),
            in_specs=[
                pl.BlockSpec(memory_space=pl.ANY),                            # feat (HBM)
                pl.BlockSpec((num_layers * k, f, f), lambda b: (0, 0, 0)),    # dilated weights
                pl.BlockSpec((num_layers, 1, f), lambda b: (0, 0, 0)),        # dilated biases
                pl.BlockSpec((num_layers, f, f), lambda b: (0, 0, 0)),        # 1x1 weights
                pl.BlockSpec((num_layers, 1, f), lambda b: (0, 0, 0)),        # 1x1 biases
                pl.BlockSpec((f, ncls_pad), lambda b: (0, 0)),                # out weight
                pl.BlockSpec((1, ncls_pad), lambda b: (0, 0)),                # out bias
            ],
            out_specs=pl.BlockSpec((None, t, ncls_pad), lambda b: (b, 0, 0)),
            scratch_shapes=[
                pltpu.VMEM((buf_rows, f), jnp.float32),    # ping (residual, f32)
                pltpu.VMEM((buf_rows, f), jnp.float32),    # pong
                pltpu.SemaphoreType.DMA,                   # feat DMA completion
            ],
        ),
        compiler_params=pltpu.CompilerParams(
            dimension_semantics=("parallel",),
            vmem_limit_bytes=vmem_limit),
    )(feat, wd_all, bd_all, w1_all, b1_all, w_out_p, b_out_p)

    return jnp.transpose(out_pad[:, :, :n_cls], (0, 2, 1))                   # (N, n_cls, T)


# ---------------------------------------------------------------------------
# Pure-JAX f32 reference mirroring the PyTorch forward (eval mode).
# ---------------------------------------------------------------------------
def _conv1d_ref(x_ncw, w, b, *, dilation=1, padding=0):
    out = lax.conv_general_dilated(
        x_ncw, w, window_strides=(1,), padding=[(padding, padding)],
        rhs_dilation=(dilation,), dimension_numbers=("NCH", "OIH", "NCH"))
    return out + b[None, :, None]


def _reference_single_stage(x_ncw, params, *, kernel_size=3, causal=False):
    w_in, b_in = params["conv_in"]
    out = _conv1d_ref(x_ncw, w_in, b_in)
    for i, (wd, bd, w1, b1) in enumerate(params["layers"]):
        d = 2 ** i
        pad = (kernel_size - 1) * d if causal else (kernel_size // 2) * d
        h = _conv1d_ref(out, wd, bd, dilation=d, padding=pad)
        h = jnp.maximum(h, 0.0)
        if causal:
            h = h[:, :, :-pad]
        h = _conv1d_ref(h, w1, b1)
        out = out + h                       # dropout is identity in eval mode
    w_out, b_out = params["conv_out"]
    return _conv1d_ref(out, w_out, b_out)


if __name__ == "__main__":
    # Small, deterministic test (B x dim x T input, as the PyTorch module expects).
    N, DIM, T = 2, 48, 40
    NUM_F, NUM_CLASSES, NUM_LAYERS, KSIZE = 64, 10, 4, 3

    key = jax.random.PRNGKey(0)
    keys = iter(jax.random.split(key, 5 + 4 * NUM_LAYERS))
    x = jax.random.normal(next(keys), (N, DIM, T), dtype=jnp.float32)
    params = {
        "conv_in": (
            0.1 * jax.random.normal(next(keys), (NUM_F, DIM, 1), jnp.float32),
            0.1 * jax.random.normal(next(keys), (NUM_F,), jnp.float32)),
        "layers": [
            (0.1 * jax.random.normal(next(keys), (NUM_F, NUM_F, KSIZE), jnp.float32),
             0.1 * jax.random.normal(next(keys), (NUM_F,), jnp.float32),
             0.1 * jax.random.normal(next(keys), (NUM_F, NUM_F, 1), jnp.float32),
             0.1 * jax.random.normal(next(keys), (NUM_F,), jnp.float32))
            for _ in range(NUM_LAYERS)
        ],
        "conv_out": (
            0.1 * jax.random.normal(next(keys), (NUM_CLASSES, NUM_F, 1), jnp.float32),
            0.1 * jax.random.normal(next(keys), (NUM_CLASSES,), jnp.float32)),
    }

    # Non-causal with a small T tile (exercises the multi-chunk + clamped
    # remainder path) and causal with the default whole-T tile (single chunk).
    for causal, tile_t in ((False, 16), (True, None)):
        out = single_stage_model_forward(x, params, kernel_size=KSIZE,
                                         causal=causal, tile_t=tile_t)
        out = jax.block_until_ready(out)
        ref = _reference_single_stage(x, params, kernel_size=KSIZE, causal=causal)
        assert out.shape == (N, NUM_CLASSES, T), out.shape
        err = float(jnp.max(jnp.abs(out - ref)))
        scale = float(jnp.max(jnp.abs(ref)))
        # bf16 MXU matmuls with f32 accumulation + f32 residual buffers:
        # allow ~2% of the logit scale plus a small absolute slack.
        assert err <= 2e-2 * scale + 5e-2, \
            f"causal={causal}: max abs err {err} (ref scale {scale})"

    print("KERNEL_OK")
</pallas_src>

<mosaic_0001>
module attributes {stable_mosaic.version = 11 : i64} {
  func.func @_rows_matmul_bias_kernel(%arg0: i32, %arg1: memref<80x48xbf16, #tpu.memory_space<vmem>>, %arg2: memref<48x64xbf16, #tpu.memory_space<vmem>>, %arg3: memref<1x64xf32, #tpu.memory_space<vmem>>, %arg4: memref<80x64xf32, #tpu.memory_space<vmem>>) attributes {dimension_semantics = [#tpu.dimension_semantics<parallel>], iteration_bounds = array<i64: 1>, scalar_prefetch = 0 : i64, scratch_operands = 0 : i64, tpu.core_type = #tpu.core_type<tc>, window_params = [{transform_indices = @transform_0, window_bounds = array<i64: 80, 48>}, {pipeline_mode = #tpu.pipeline_mode<synchronous>, transform_indices = @transform_1, window_bounds = array<i64: 48, 64>}, {pipeline_mode = #tpu.pipeline_mode<synchronous>, transform_indices = @transform_2, window_bounds = array<i64: 1, 64>}, {transform_indices = @transform_3, window_bounds = array<i64: 80, 64>}]} {
    %c0 = arith.constant 0 : index
    %c0_0 = arith.constant 0 : index
    %0 = vector.load %arg1[%c0, %c0_0] : memref<80x48xbf16, #tpu.memory_space<vmem>>, vector<80x48xbf16>
    %c0_1 = arith.constant 0 : index
    %c0_2 = arith.constant 0 : index
    %1 = vector.load %arg2[%c0_1, %c0_2] : memref<48x64xbf16, #tpu.memory_space<vmem>>, vector<48x64xbf16>
    %cst = arith.constant dense<0.000000e+00> : vector<80x64xf32>
    %2 = tpu.matmul %0, %1, %cst {dimension_numbers = #tpu.dot_dimension_numbers<[1], [0], [0], [1], [0, 0, 1, 1], [], []>} : vector<80x48xbf16>, vector<48x64xbf16>, vector<80x64xf32> -> vector<80x64xf32>
    %c0_3 = arith.constant 0 : index
    %c0_4 = arith.constant 0 : index
    %3 = vector.load %arg3[%c0_3, %c0_4] : memref<1x64xf32, #tpu.memory_space<vmem>>, vector<1x64xf32>
    %4 = vector.broadcast %3 : vector<1x64xf32> to vector<80x64xf32>
    %5 = arith.addf %2, %4 : vector<80x64xf32>
    %c0_5 = arith.constant 0 : index
    %c0_6 = arith.constant 0 : index
    %6 = vector.load %arg4[%c0_5, %c0_6] : memref<80x64xf32, #tpu.memory_space<vmem>>, vector<80x64xf32>
    tpu.vector_store %arg4[%c0_5, %c0_6], %5 {strides = array<i32>} : memref<80x64xf32, #tpu.memory_space<vmem>>, vector<80x64xf32>,
    return
  }
  func.func @transform_0(%arg0: i32) -> (i32, i32) {
    %c0_i32 = arith.constant 0 : i32
    %c0_i32_0 = arith.constant 0 : i32
    return %arg0, %c0_i32 : i32, i32
  }
  func.func @transform_1(%arg0: i32) -> (i32, i32) {
    %c0_i32 = arith.constant 0 : i32
    %c0_i32_0 = arith.constant 0 : i32
    %c0_i32_1 = arith.constant 0 : i32
    return %c0_i32, %c0_i32_0 : i32, i32
  }
  func.func @transform_2(%arg0: i32) -> (i32, i32) {
    %c0_i32 = arith.constant 0 : i32
    %c0_i32_0 = arith.constant 0 : i32
    %c0_i32_1 = arith.constant 0 : i32
    return %c0_i32, %c0_i32_0 : i32, i32
  }
  func.func @transform_3(%arg0: i32) -> (i32, i32) {
    %c0_i32 = arith.constant 0 : i32
    %c0_i32_0 = arith.constant 0 : i32
    return %arg0, %c0_i32 : i32, i32
  }
}

</mosaic_0001>

<llo_original>
// kernel: tpu_custom_call.1
$region0: #{tpu_custom_call.1}
  #allocation0 [shape = 'u32[]', space=smem, size = 0x4, offset = 0x4, fixed_abs, tag = 'smem constant byte address 0x4 - core index']
  #allocation1 [shape = 'u32[72,128]{1,0:T(1,128)}', space=vmem, size = 0x9000, scoped, tag = 'internal scratch']
  %s0 = inlined_call_operand.vmem [shape: bf16[80,48], index: 0, kind: input, shape index: {}]
  %s1 = inlined_call_operand.vmem [shape: bf16[48,64], index: 1, kind: input, shape index: {}]
  %s2 = inlined_call_operand.vmem [shape: f32[1,64], index: 2, kind: input, shape index: {}]
  %s3 = inlined_call_operand.vmem [shape: f32[80,64], index: 3, kind: output, shape index: {}]
  %s4 = sld [smem:[#allocation0]]
  $region22: #{tpu_custom_call.1} parent=0
    _
  %s6 = ssub.s32 1, %s4
  %s7 = scalar_select 0, %s6, %s4
  // Predicated region
  $region2: #{tpu_custom_call.1} parent=0 // pred_check
    _
  $region3: #{tpu_custom_call.1} parent=0 // pred_check_branch
    %9 = sbr.rel (0) target = $region5
  $region4: #{tpu_custom_call.1} parent=0 // pred_region
    _
  $region5: #{tpu_custom_call.1} parent=0 // pred_fallthru
    _
  // Predicated region
  $region6: #{tpu_custom_call.1} parent=0 // pred_check
    _
  $region7: #{tpu_custom_call.1} parent=0 // pred_check_branch
    %11 = sbr.rel (0) target = $region9
  $region8: #{tpu_custom_call.1} parent=0 // pred_region
    _
  $region9: #{tpu_custom_call.1} parent=0 // pred_fallthru
    _
  // Predicated region
  $region10: #{tpu_custom_call.1} parent=0 // pred_check
    _
  $region11: #{tpu_custom_call.1} parent=0 // pred_check_branch
    %13 = sbr.rel (0) target = $region13
  $region12: #{tpu_custom_call.1} parent=0 // pred_region
    _
  $region13: #{tpu_custom_call.1} parent=0 // pred_fallthru
    _
  %v15 = vld [vmem:[%s0] sm:$0xf]
  %v16 = vld [vmem:[%s0 + $0x4] sm:$0xf]
  %v17 = vld [vmem:[%s0 + $0x8] sm:$0xf]
  %v18 = vld [vmem:[%s0 + $0xc] sm:$0xf]
  %v19 = vld [vmem:[%s0 + $0x10] sm:$0xf]
  %v20 = vld [vmem:[%s0 + $0x14] sm:$0xf]
  %v21 = vld [vmem:[%s0 + $0x18] sm:$0xf]
  %v22 = vld [vmem:[%s0 + $0x1c] sm:$0xf]
  %v23 = vld [vmem:[%s0 + $0x20] sm:$0xf]
  %v24 = vld [vmem:[%s0 + $0x24] sm:$0xf]
  %v25 = vld [vmem:[%s1] sm:$0xf]
  %v26 = vld [vmem:[%s1 + $0x4] sm:$0xf]
  %v27 = vld [vmem:[%s1 + $0x8] sm:$0xf]
  %v28 = vld [vmem:[%s1 + $0xc] sm:$0xf]
  %v29 = vld [vmem:[%s1 + $0x10] sm:$0xf]
  %v30 = vld [vmem:[%s1 + $0x14] sm:$0xf]
  %v31 = vld [vmem:[%s2] sm:$0x1]
  %v33 = vperm.slane %v31, 0
  %v45 = vunpack.c.l.b16 %v15
  %v46 = vunpack.c.l.b16 %v16
  %v47 = vunpack.c.l.b16 %v17
  %v48 = vunpack.c.l.b16 %v18
  %v49 = vunpack.c.l.b16 %v19
  %v50 = vunpack.c.l.b16 %v20
  %v51 = vunpack.c.l.b16 %v21
  %v52 = vunpack.c.l.b16 %v22
  %v53 = vunpack.c.l.b16 %v23
  %v54 = vunpack.c.l.b16 %v24
  %v55 = vpack.c.b16 %v46, %v45
  %v56 = vpack.c.b16 %v48, %v47
  %v57 = vpack.c.b16 %v50, %v49
  %v58 = vpack.c.b16 %v52, %v51
  %v59 = vpack.c.b16 %v54, %v53
  %v66 = vunpack.c.l.b16 %v25
  %v67 = vunpack.c.l.b16 %v26
  %v68 = vunpack.c.l.b16 %v27
  %v69 = vunpack.c.l.b16 %v28
  %v70 = vunpack.c.l.b16 %v29
  %v71 = vunpack.c.l.b16 %v30
  %v72 = vpack.c.b16 %v67, %v66
  %v73 = vpack.c.b16 %v69, %v68
  %v74 = vpack.c.b16 %v71, %v70
  %vm78 = vcmask 392192
  %v80 = vsel %vm78, %v55, 0
  %v83 = vsel %vm78, %v56, 0
  %v86 = vsel %vm78, %v57, 0
  %v89 = vsel %vm78, %v58, 0
  %v92 = vsel %vm78, %v59, 0
  %94 = vmatpush.bf16.msra.mxu0 0
  %95 = vmatpush.bf16.msra.mxu0 0
  %96 = vmatpush.bf16.msra.mxu0 0
  %97 = vmatpush.bf16.msra.mxu0 0
  %98 = vmatpush.bf16.msra.mxu0 0
  %99 = vmatpush.bf16.msra.mxu0 %v74
  %100 = vmatpush.bf16.msra.mxu0 %v73
  %101 = vmatpush.bf16.msra.mxu0 %v72
  %102 = vmatmul.bf16.gmra.mxu0 %v80
  %v103 = vpop.f32.mrf.mxu0
  %v104 = vadd.f32 %v33, %v103
  %v105 = vpop.f32.mrf.mxu0
  %v106 = vadd.f32 %v33, %v105
  %107 = vmatmul.bf16.gmra.mxu0 %v83
  %v108 = vpop.f32.mrf.mxu0
  %v109 = vadd.f32 %v33, %v108
  %v110 = vpop.f32.mrf.mxu0
  %v111 = vadd.f32 %v33, %v110
  %112 = vmatmul.bf16.gmra.mxu0 %v86
  %v113 = vpop.f32.mrf.mxu0
  %v114 = vadd.f32 %v33, %v113
  %v115 = vpop.f32.mrf.mxu0
  %v116 = vadd.f32 %v33, %v115
  %117 = vmatmul.bf16.gmra.mxu0 %v89
  %v118 = vpop.f32.mrf.mxu0
  %v119 = vadd.f32 %v33, %v118
  %v120 = vpop.f32.mrf.mxu0
  %v121 = vadd.f32 %v33, %v120
  %122 = vmatmul.bf16.gmra.mxu0 %v92
  %v123 = vpop.f32.mrf.mxu0
  %v124 = vadd.f32 %v33, %v123
  %v125 = vpop.f32.mrf.mxu0
  %v126 = vadd.f32 %v33, %v125
  %127 = vdwg.mxu0
  %vm128 = vcmask 523264
  %129 = vst.msk [vmem:[%s3] sm:$0xff] %vm128, %v104
  %130 = vst.msk [vmem:[%s3 + $0x8] sm:$0xff] %vm128, %v106
  %131 = vst.msk [vmem:[%s3 + $0x10] sm:$0xff] %vm128, %v109
  %132 = vst.msk [vmem:[%s3 + $0x18] sm:$0xff] %vm128, %v111
  %133 = vst.msk [vmem:[%s3 + $0x20] sm:$0xff] %vm128, %v114
  %134 = vst.msk [vmem:[%s3 + $0x28] sm:$0xff] %vm128, %v116
  %135 = vst.msk [vmem:[%s3 + $0x30] sm:$0xff] %vm128, %v119
  %136 = vst.msk [vmem:[%s3 + $0x38] sm:$0xff] %vm128, %v121
  %137 = vst.msk [vmem:[%s3 + $0x40] sm:$0xff] %vm128, %v124
  %138 = vst.msk [vmem:[%s3 + $0x48] sm:$0xff] %vm128, %v126
  // Predicated region
  $region14: #{tpu_custom_call.1} parent=0 // pred_check
    _
  $region15: #{tpu_custom_call.1} parent=0 // pred_check_branch
    %140 = sbr.rel (0) target = $region17
  $region16: #{tpu_custom_call.1} parent=0 // pred_region
    _
  $region17: #{tpu_custom_call.1} parent=0 // pred_fallthru
    _
  // Predicated region
  $region18: #{tpu_custom_call.1} parent=0 // pred_check
    _
  $region19: #{tpu_custom_call.1} parent=0 // pred_check_branch
    %142 = sbr.rel (0) target = $region21
  $region20: #{tpu_custom_call.1} parent=0 // pred_region
    _
  $region21: #{tpu_custom_call.1} parent=0 // pred_fallthru
    _

</llo_original>
